<compile_context>
chip_gen: v6e
topology: v6e:2x2x1
jax: 0.10.0
libtpu: 0.0.40
codegen_flags: <defaults>
</compile_context>

<pallas_src>
import jax
import jax.numpy as jnp
from jax.experimental import pallas as pl
from jax.experimental.pallas import tpu as pltpu

LANES = 1024  # lane-dense last dim (multiple of 128)


def _device_config():
    """Returns (tile_rows, vmem_limit_bytes_or_None, row_axis_semantics)."""
    try:
        kind = jax.devices()[0].device_kind.lower()
    except Exception:  # defensive: unknown backend
        kind = ""
    if "v7" in kind or "7x" in kind:
        # 2048x1024 f32 = 8 MiB tiles; 4 double-buffered tiles = 32 MiB, so
        # raise the scoped-VMEM limit above the 32 MiB default (64 MiB phys).
        return 2048, 40 << 20, getattr(pltpu, "CORE_PARALLEL", "parallel")
    if "v6" in kind:
        # 4 MiB tiles -> 16 MiB resident; fits the 32 MiB default limit.
        return 1024, None, "parallel"
    # v5e / unknown: 2 MiB tiles -> 8 MiB resident (16 MiB default limit).
    return 512, None, "parallel"


def _scale_kernel(p_ref, x_ref, o_ref):
    # p_ref: (1, 1) f32 scalar in SMEM; x_ref / o_ref: (tile_r, LANES) VMEM tiles.
    p = p_ref[0, 0]
    o_ref[...] = p.astype(o_ref.dtype) * x_ref[...].astype(o_ref.dtype)


def _scale_2d(p2d, x2d, out_dtype):
    """Scalar * (rows, LANES) slab via a 1-D row grid (double-buffered DMA)."""
    rows, lanes = x2d.shape
    tile_r, vmem_limit, row_sem = _device_config()
    tile_r = min(tile_r, rows)         # full-extent block for small inputs
    grid = (pl.cdiv(rows, tile_r),)    # ragged last row-block is masked

    cp_kwargs = dict(dimension_semantics=(row_sem,))
    if vmem_limit is not None:
        cp_kwargs["vmem_limit_bytes"] = vmem_limit

    return pl.pallas_call(
        _scale_kernel,
        out_shape=jax.ShapeDtypeStruct((rows, lanes), out_dtype),
        grid=grid,
        in_specs=[
            pl.BlockSpec(memory_space=pltpu.SMEM),            # scalar param
            pl.BlockSpec((tile_r, lanes), lambda i: (i, 0)),   # lane-dense tile
        ],
        out_specs=pl.BlockSpec((tile_r, lanes), lambda i: (i, 0)),
        compiler_params=pltpu.CompilerParams(**cp_kwargs),
    )(p2d, x2d)


@jax.jit
def oscilator_forward(param, x):
    """param: (1,) float32 (torch.nn.Parameter(torch.zeros(1))); x: any shape."""
    out_dtype = jnp.promote_types(param.dtype, x.dtype)   # PyTorch promotion
    n = x.size
    if n == 0:
        return jnp.zeros(x.shape, out_dtype)

    p2d = param.reshape(1, 1).astype(jnp.float32)
    flat = x.reshape(-1)

    rows = n // LANES
    n_bulk = rows * LANES

    pieces = []
    if rows > 0:
        x_bulk = flat if n_bulk == n else flat[:n_bulk]
        bulk = _scale_2d(p2d, x_bulk.reshape(rows, LANES), out_dtype)
        pieces.append(bulk.reshape(-1))
    if n_bulk != n:
        # <LANES tail (or whole array when n < LANES): a single tiny XLA
        # fusion beats a pad/slice pass or a lane-sparse kernel launch.
        tail = flat[n_bulk:].astype(out_dtype) * p2d[0, 0].astype(out_dtype)
        pieces.append(tail)

    out_flat = pieces[0] if len(pieces) == 1 else jnp.concatenate(pieces)
    return out_flat.reshape(x.shape)


if __name__ == "__main__":
    key = jax.random.PRNGKey(0)
    # Matching the PyTorch init: myparam = zeros(1), float32.
    myparam = jnp.zeros((1,), dtype=jnp.float32)
    x = jax.random.normal(key, (2, 4, 16, 16), dtype=jnp.float32)

    out = oscilator_forward(myparam, x)
    jax.block_until_ready(out)
    assert out.shape == x.shape and out.dtype == jnp.float32
    assert jnp.allclose(out, myparam * x), "mismatch vs reference (zero param)"

    # Non-zero parameter value.
    p2 = jnp.array([1.5], dtype=jnp.float32)
    out2 = oscilator_forward(p2, x)
    jax.block_until_ready(out2)
    assert jnp.allclose(out2, p2 * x, rtol=1e-6, atol=1e-6), "mismatch (p=1.5)"

    # bfloat16 input: result promotes to float32 like PyTorch (f32 param * bf16 x).
    x_bf16 = x.astype(jnp.bfloat16)
    out_bf = oscilator_forward(p2, x_bf16)
    jax.block_until_ready(out_bf)
    assert out_bf.dtype == jnp.float32
    assert jnp.allclose(out_bf, p2 * x_bf16, rtol=1e-2, atol=1e-2), "mismatch (bf16)"

    # Unaligned shape -> exercises bulk-kernel + XLA-tail path (no pad/slice).
    x_big = jax.random.normal(jax.random.PRNGKey(1), (3, 7, 33, 65), dtype=jnp.float32)
    out_big = oscilator_forward(p2, x_big)
    jax.block_until_ready(out_big)
    assert jnp.allclose(out_big, p2 * x_big, rtol=1e-6, atol=1e-6), "mismatch (big)"

    print("KERNEL_OK")
</pallas_src>

<mosaic_0001>
module attributes {stable_mosaic.version = 11 : i64} {
  func.func @_scale_kernel(%arg0: i32, %arg1: memref<1x1xf32, #tpu.memory_space<smem>>, %arg2: memref<2x1024xf32, #tpu.memory_space<vmem>>, %arg3: memref<2x1024xf32, #tpu.memory_space<vmem>>) attributes {dimension_semantics = [#tpu.dimension_semantics<parallel>], iteration_bounds = array<i64: 1>, scalar_prefetch = 0 : i64, scratch_operands = 0 : i64, tpu.core_type = #tpu.core_type<tc>, window_params = [{transform_indices = @transform_0, window_bounds = array<i64: 1, 1>}, {transform_indices = @transform_1, window_bounds = array<i64: 2, 1024>}, {transform_indices = @transform_2, window_bounds = array<i64: 2, 1024>}]} {
    %c0 = arith.constant 0 : index
    %c0_0 = arith.constant 0 : index
    %0 = memref.load %arg1[%c0, %c0_0] : memref<1x1xf32, #tpu.memory_space<smem>>
    %c0_1 = arith.constant 0 : index
    %c0_2 = arith.constant 0 : index
    %1 = vector.load %arg2[%c0_1, %c0_2] : memref<2x1024xf32, #tpu.memory_space<vmem>>, vector<2x1024xf32>
    %2 = vector.broadcast %0 : f32 to vector<2x1024xf32>
    %3 = arith.mulf %2, %1 : vector<2x1024xf32>
    %c0_3 = arith.constant 0 : index
    %c0_4 = arith.constant 0 : index
    %4 = vector.load %arg3[%c0_3, %c0_4] : memref<2x1024xf32, #tpu.memory_space<vmem>>, vector<2x1024xf32>
    tpu.vector_store %arg3[%c0_3, %c0_4], %3 {strides = array<i32>} : memref<2x1024xf32, #tpu.memory_space<vmem>>, vector<2x1024xf32>,
    return
  }
  func.func @transform_0(%arg0: i32) -> (i32, i32) {
    %c0_i32 = arith.constant 0 : i32
    %c0_i32_0 = arith.constant 0 : i32
    %c0_i32_1 = arith.constant 0 : i32
    return %c0_i32, %c0_i32_0 : i32, i32
  }
  func.func @transform_1(%arg0: i32) -> (i32, i32) {
    %c0_i32 = arith.constant 0 : i32
    %c0_i32_0 = arith.constant 0 : i32
    return %arg0, %c0_i32 : i32, i32
  }
  func.func @transform_2(%arg0: i32) -> (i32, i32) {
    %c0_i32 = arith.constant 0 : i32
    %c0_i32_0 = arith.constant 0 : i32
    return %arg0, %c0_i32 : i32, i32
  }
}

</mosaic_0001>

<llo_original>
// kernel: oscilator_forward.1
$region0: #{oscilator_forward.1}
  #allocation0 [shape = 'u32[]', space=smem, size = 0x4, offset = 0x4, fixed_abs, tag = 'smem constant byte address 0x4 - core index']
  #allocation1 [shape = 'u32[144,128]{1,0:T(1,128)}', space=vmem, size = 0x12000, scoped, tag = 'internal scratch']
  #allocation2 [shape = 'f32[1,1]{1,0:T(1,128)S(6)}', space=smem, size = 0x200, scoped, tag = 'scoped memory for oscilator_forward.1']
  %s0 = inlined_call_operand.<no memory space> [shape: f32[1,1], index: 0, kind: input, shape index: {}]
  %s1 = inlined_call_operand.vmem [shape: f32[2,1024], index: 1, kind: input, shape index: {}]
  %s2 = inlined_call_operand.vmem [shape: f32[2,1024], index: 2, kind: output, shape index: {}]
  %s3 = sld [smem:[#allocation0]]
  $region18: #{oscilator_forward.1} parent=0
    _
  %s5 = ssub.s32 1, %s3
  %s6 = scalar_select 0, %s5, %s3
  %7 = sst [smem:[#allocation2]] %s0
  // Predicated region
  $region2: #{oscilator_forward.1} parent=0 // pred_check
    _
  $region3: #{oscilator_forward.1} parent=0 // pred_check_branch
    %9 = sbr.rel (0) target = $region5
  $region4: #{oscilator_forward.1} parent=0 // pred_region
    _
  $region5: #{oscilator_forward.1} parent=0 // pred_fallthru
    _
  // Predicated region
  $region6: #{oscilator_forward.1} parent=0 // pred_check
    _
  $region7: #{oscilator_forward.1} parent=0 // pred_check_branch
    %11 = sbr.rel (0) target = $region9
  $region8: #{oscilator_forward.1} parent=0 // pred_region
    _
  $region9: #{oscilator_forward.1} parent=0 // pred_fallthru
    _
  %s12 = sld [smem:[#allocation2]]
  %v13 = vld [vmem:[%s1] sm:$0xff]
  %v14 = vld [vmem:[%s1 + $0x8] sm:$0xff]
  %v15 = vstv %s12
  %v16 = vmul.f32 %v15, %v13
  %v17 = vmul.f32 %v15, %v14
  %18 = vst [vmem:[%s2] sm:$0xff] %v16
  %19 = vst [vmem:[%s2 + $0x8] sm:$0xff] %v17
  // Predicated region
  $region10: #{oscilator_forward.1} parent=0 // pred_check
    _
  $region11: #{oscilator_forward.1} parent=0 // pred_check_branch
    %21 = sbr.rel (0) target = $region13
  $region12: #{oscilator_forward.1} parent=0 // pred_region
    _
  $region13: #{oscilator_forward.1} parent=0 // pred_fallthru
    _
  // Predicated region
  $region14: #{oscilator_forward.1} parent=0 // pred_check
    _
  $region15: #{oscilator_forward.1} parent=0 // pred_check_branch
    %23 = sbr.rel (0) target = $region17
  $region16: #{oscilator_forward.1} parent=0 // pred_region
    _
  $region17: #{oscilator_forward.1} parent=0 // pred_fallthru
    _

</llo_original>
